<compile_context>
chip_gen: v6e
topology: v6e:2x2x1
jax: 0.10.0
libtpu: 0.0.40
codegen_flags: <defaults>
</compile_context>

<pallas_src>
import numpy as np
import jax
import jax.numpy as jnp
from jax import lax
from jax.experimental import pallas as pl
from jax.experimental.pallas import tpu as pltpu


# ----------------------------------------------------------------------------
# Generation detection (best effort, with safe fallbacks).
# ----------------------------------------------------------------------------
def _device_kind() -> str:
    try:
        return (jax.devices()[0].device_kind or "").lower()
    except Exception:
        return ""


def _num_tensorcores() -> int:
    """2 on chips that expose two TensorCores to one Pallas call (v7x, v4-class
    megacore); 1 on v5e/v6e where a 2-way split would only serialize."""
    kind = _device_kind()
    if any(tag in kind for tag in ("7x", "v7", "v4", "v5p")):
        return 2
    return 1


def _vmem_capacity_bytes() -> int:
    try:
        cap = getattr(pltpu.get_tpu_info(), "vmem_capacity_bytes", None)
        if cap:
            return int(cap)
    except Exception:
        pass
    return 64 * 1024 * 1024  # conservative: v7x per-TC VMEM


# ----------------------------------------------------------------------------
# Kernel
# ----------------------------------------------------------------------------
def _make_rmse_kernel(eps: float, n_rows: int, hw: int, ts: int, hw_chunk: int,
                      steps_per_core: int, hw_blocks: int, mask_lanes: bool):
    inv_hw = 1.0 / float(hw)

    def kernel(yhat_ref, y_ref, out_ref, row_acc_ref, acc_ref):
        c = pl.program_id(0)   # parallel: TensorCore split over row-block ranges
        i = pl.program_id(1)   # arbitrary: row blocks within this core's range
        j = pl.program_id(2)   # arbitrary: H*W lane chunks (innermost)

        @pl.when(jnp.logical_and(i == 0, j == 0))
        def _():
            acc_ref[...] = jnp.zeros_like(acc_ref)

        @pl.when(j == 0)
        def _():
            row_acc_ref[...] = jnp.zeros_like(row_acc_ref)

        # Hot path: stream a (ts, hw_chunk) tile of each input and accumulate
        # the per-row sum of squared differences (native dtype over the DMA,
        # f32 math in-kernel).
        d = yhat_ref[...].astype(jnp.float32) - y_ref[...].astype(jnp.float32)
        if mask_lanes:  # partial H*W tail chunk: zero out-of-range lanes
            lane_ids = j * hw_chunk + lax.broadcasted_iota(
                jnp.int32, (ts, hw_chunk), 1)
            d = jnp.where(lane_ids < hw, d, jnp.float32(0.0))
        row_acc_ref[...] += jnp.sum(d * d, axis=-1, keepdims=True)     # (ts, 1)

        @pl.when(j == hw_blocks - 1)
        def _():
            # sqrt(mean + eps) per row, then mask rows outside [0, n_rows):
            # partial tail row block and any clamped duplicate block contribute
            # exactly zero (row ids come from the logical grid position, not
            # the clamped block index).
            r = jnp.sqrt(row_acc_ref[...] * jnp.float32(inv_hw) + jnp.float32(eps))
            row0 = (c * steps_per_core + i) * ts
            row_ids = row0 + lax.broadcasted_iota(jnp.int32, (ts, 1), 0)
            r = jnp.where(row_ids < n_rows, r, jnp.float32(0.0))
            acc_ref[...] += jnp.sum(r, axis=0, keepdims=True)          # (1, 1)

        @pl.when(jnp.logical_and(i == steps_per_core - 1, j == hw_blocks - 1))
        def _():
            out_ref[0] = acc_ref[...]   # single store of this core's partial sum

    return kernel


# ----------------------------------------------------------------------------
# Wrapper
# ----------------------------------------------------------------------------
def rmse_loss(yhat, y, eps: float = 1e-6, target_block_bytes=None):
    """Pallas implementation of RMSELoss.forward(yhat, y)."""
    assert yhat.shape == y.shape, "yhat and y must have the same shape"
    assert yhat.ndim >= 2, "inputs must have at least 2 dims (H, W)"
    *lead, H, W = yhat.shape
    n = int(np.prod(lead)) if lead else 1
    hw = H * W

    # Lane-dense layout: one row per slice, H*W along the lane dimension.
    yhat2 = yhat.reshape(n, hw)
    y2 = y.reshape(n, hw)

    itemsize = np.dtype(yhat.dtype).itemsize
    sub = 8 * max(1, 4 // itemsize)          # sublane packing: 8 f32 / 16 bf16 / 32 i8

    # --- Generation-aware block budget & VMEM limit ------------------------
    vmem_cap = _vmem_capacity_bytes()
    big_vmem = vmem_cap >= 100 * 1024 * 1024          # v5e/v6e: 128 MiB per TC
    vmem_limit = (64 if big_vmem else 48) * 1024 * 1024
    if target_block_bytes is None:
        # 2 inputs x 2 pipeline buffers x block <= 48 MiB (big) / 32 MiB (v7x),
        # leaving headroom under vmem_limit for elementwise temporaries.
        target_block_bytes = (12 if big_vmem else 8) * 1024 * 1024

    # --- Tile shape ---------------------------------------------------------
    rows_fit = target_block_bytes // max(1, hw * itemsize)
    if rows_fit >= sub or hw <= 128:
        # Common case: full H*W width per block, as many rows as fit.
        hw_chunk = hw
        ts = max(sub, (rows_fit // sub) * sub)
        if ts >= n:
            ts = n                           # full first dim always allowed
    else:
        # H*W too wide for the budget: tile the lane dim in multiples of 128
        # and keep the minimal sublane-packed row count.
        ts = sub if n > sub else n
        lane_budget = max(128, ((target_block_bytes // max(1, ts * itemsize)) // 128) * 128)
        hw_cap = hw if hw % 128 == 0 else (hw // 128) * 128
        hw_chunk = min(lane_budget, hw_cap)

    hw_blocks = int(pl.cdiv(hw, hw_chunk))
    mask_lanes = (hw % hw_chunk) != 0
    num_row_blocks = int(pl.cdiv(n, ts))

    # --- TensorCore split (only where it buys a second HBM stream) ---------
    ncores = _num_tensorcores()
    if num_row_blocks < 2:
        ncores = 1
    if ncores == 2 and num_row_blocks % 2 == 1:
        # Avoid the clamped duplicate tail block (pure wasted HBM traffic):
        # nudge ts so the block count is even, else fall back to one core for
        # small inputs where the duplicate would be a large fraction.
        if ts > sub:
            ts2 = ((int(pl.cdiv(n, num_row_blocks + 1)) + sub - 1) // sub) * sub
            if ts2 >= sub and int(pl.cdiv(n, ts2)) % 2 == 0:
                ts = ts2
                num_row_blocks = int(pl.cdiv(n, ts))
        if num_row_blocks % 2 == 1 and num_row_blocks < 8:
            ncores = 1
    steps_per_core = int(pl.cdiv(num_row_blocks, ncores))

    def in_map(c, i, j):
        # Clamp so no row block starts fully out of bounds; the in-kernel row
        # mask zeroes any duplicated / out-of-range rows.
        blk = jnp.minimum(c * steps_per_core + i, num_row_blocks - 1)
        return (blk, j)

    kernel = _make_rmse_kernel(eps, n, hw, ts, hw_chunk,
                               steps_per_core, hw_blocks, mask_lanes)

    cost = pl.CostEstimate(
        flops=int(3 * n * hw + 4 * n),
        transcendentals=int(n),
        bytes_accessed=int(2 * n * hw * itemsize + ncores * 4),
    )

    partials = pl.pallas_call(
        kernel,
        out_shape=jax.ShapeDtypeStruct((ncores, 1, 1), jnp.float32),
        grid=(ncores, steps_per_core, hw_blocks),
        in_specs=[
            pl.BlockSpec((ts, hw_chunk), in_map),
            pl.BlockSpec((ts, hw_chunk), in_map),
        ],
        # One (1,1) partial per core; constant along both reduction axes.
        out_specs=pl.BlockSpec((1, 1, 1), lambda c, i, j: (c, 0, 0)),
        scratch_shapes=[
            pltpu.VMEM((ts, 1), jnp.float32),   # per-row sum of squares
            pltpu.VMEM((1, 1), jnp.float32),    # per-core scalar partial
        ],
        compiler_params=pltpu.CompilerParams(
            dimension_semantics=("parallel", "arbitrary", "arbitrary"),
            vmem_limit_bytes=vmem_limit,
        ),
        cost_estimate=cost,
    )(yhat2, y2)

    return jnp.sum(partials) / jnp.float32(n)


def rmse_loss_ref(yhat, y, eps: float = 1e-6):
    """Pure-JAX reference matching the PyTorch RMSE()."""
    r = jnp.sqrt(jnp.mean(jnp.square(yhat - y) + eps, axis=(-1, -2)))
    return jnp.mean(r)


if __name__ == "__main__":
    key = jax.random.PRNGKey(0)
    keys = jax.random.split(key, 8)

    # Test 1: nominal shape, auto-sized single block / single core path.
    B, C, Hd, Wd = 2, 4, 16, 16
    yhat = jax.random.normal(keys[0], (B, C, Hd, Wd), dtype=jnp.float32)
    y = jax.random.normal(keys[1], (B, C, Hd, Wd), dtype=jnp.float32)
    loss = jax.block_until_ready(rmse_loss(yhat, y))
    ref = jax.block_until_ready(rmse_loss_ref(yhat, y))
    np.testing.assert_allclose(np.asarray(loss), np.asarray(ref), rtol=1e-5, atol=1e-6)

    # Test 2: tiny block budget -> H*W lane tiling (hw=256 -> 2 chunks of 128),
    # 2 row blocks and a ragged row tail (n=12, ts=8).
    yhat2 = jax.random.normal(keys[2], (3, 4, Hd, Wd), dtype=jnp.float32)
    y2 = jax.random.normal(keys[3], (3, 4, Hd, Wd), dtype=jnp.float32)
    loss2 = jax.block_until_ready(rmse_loss(yhat2, y2, target_block_bytes=4096))
    ref2 = jax.block_until_ready(rmse_loss_ref(yhat2, y2))
    np.testing.assert_allclose(np.asarray(loss2), np.asarray(ref2), rtol=1e-5, atol=1e-6)

    # Test 3: H*W not a multiple of 128 (hw=320) with lane tiling -> exercises
    # the partial lane-tail mask plus the ragged row tail.
    yhat3 = jax.random.normal(keys[4], (4, 3, 16, 20), dtype=jnp.float32)
    y3 = jax.random.normal(keys[5], (4, 3, 16, 20), dtype=jnp.float32)
    loss3 = jax.block_until_ready(rmse_loss(yhat3, y3, target_block_bytes=2048))
    ref3 = jax.block_until_ready(rmse_loss_ref(yhat3, y3))
    np.testing.assert_allclose(np.asarray(loss3), np.asarray(ref3), rtol=1e-5, atol=1e-6)

    # Test 4: odd row-block count (n=20, ts=8 -> 3 blocks) -> exercises the
    # even-split / single-core fallback logic.
    yhat4 = jax.random.normal(keys[6], (5, 4, Hd, Wd), dtype=jnp.float32)
    y4 = jax.random.normal(keys[7], (5, 4, Hd, Wd), dtype=jnp.float32)
    loss4 = jax.block_until_ready(rmse_loss(yhat4, y4, target_block_bytes=8192))
    ref4 = jax.block_until_ready(rmse_loss_ref(yhat4, y4))
    np.testing.assert_allclose(np.asarray(loss4), np.asarray(ref4), rtol=1e-5, atol=1e-6)

    print("KERNEL_OK")
</pallas_src>

<mosaic_0001>
module attributes {stable_mosaic.version = 11 : i64} {
  func.func @kernel(%arg0: i32, %arg1: i32, %arg2: i32, %arg3: memref<8x256xf32, #tpu.memory_space<vmem>>, %arg4: memref<8x256xf32, #tpu.memory_space<vmem>>, %arg5: memref<1x1x1xf32, #tpu.memory_space<vmem>>, %arg6: memref<8x1xf32, #tpu.memory_space<vmem>>, %arg7: memref<1x1xf32, #tpu.memory_space<vmem>>) attributes {dimension_semantics = [#tpu.dimension_semantics<parallel>, #tpu.dimension_semantics<arbitrary>, #tpu.dimension_semantics<arbitrary>], iteration_bounds = array<i64: 1, 1, 1>, scalar_prefetch = 0 : i64, scratch_operands = 2 : i64, tpu.core_type = #tpu.core_type<tc>, window_params = [{transform_indices = @transform_0, window_bounds = array<i64: 8, 256>}, {transform_indices = @transform_1, window_bounds = array<i64: 8, 256>}, {transform_indices = @transform_2, window_bounds = array<i64: 1, 1, 1>}]} {
    %c0_i32 = arith.constant 0 : i32
    %0 = arith.cmpi eq, %arg1, %c0_i32 : i32
    %c0_i32_0 = arith.constant 0 : i32
    %1 = arith.cmpi eq, %arg2, %c0_i32_0 : i32
    %2 = arith.andi %0, %1 : i1
    %3 = arith.extui %2 : i1 to i32
    %c0_i32_1 = arith.constant 0 : i32
    %4 = arith.cmpi ne, %3, %c0_i32_1 : i32
    scf.if %4 {
      %cst_16 = arith.constant 0.000000e+00 : f32
      %25 = vector.broadcast %cst_16 : f32 to vector<1x1xf32>
      %c0_17 = arith.constant 0 : index
      %c0_18 = arith.constant 0 : index
      %26 = vector.load %arg7[%c0_17, %c0_18] : memref<1x1xf32, #tpu.memory_space<vmem>>, vector<1x1xf32>
      tpu.vector_store %arg7[%c0_17, %c0_18], %25 {strides = array<i32>} : memref<1x1xf32, #tpu.memory_space<vmem>>, vector<1x1xf32>,
    } else {
    }
    %c0_i32_2 = arith.constant 0 : i32
    %5 = arith.cmpi eq, %arg2, %c0_i32_2 : i32
    %6 = arith.extui %5 : i1 to i32
    %c0_i32_3 = arith.constant 0 : i32
    %7 = arith.cmpi ne, %6, %c0_i32_3 : i32
    scf.if %7 {
      %cst_16 = arith.constant 0.000000e+00 : f32
      %25 = vector.broadcast %cst_16 : f32 to vector<8x1xf32>
      %c0_17 = arith.constant 0 : index
      %c0_18 = arith.constant 0 : index
      %26 = vector.load %arg6[%c0_17, %c0_18] : memref<8x1xf32, #tpu.memory_space<vmem>>, vector<8x1xf32>
      tpu.vector_store %arg6[%c0_17, %c0_18], %25 {strides = array<i32>} : memref<8x1xf32, #tpu.memory_space<vmem>>, vector<8x1xf32>,
    } else {
    }
    %c0 = arith.constant 0 : index
    %c0_4 = arith.constant 0 : index
    %8 = vector.load %arg3[%c0, %c0_4] : memref<8x256xf32, #tpu.memory_space<vmem>>, vector<8x256xf32>
    %c0_5 = arith.constant 0 : index
    %c0_6 = arith.constant 0 : index
    %9 = vector.load %arg4[%c0_5, %c0_6] : memref<8x256xf32, #tpu.memory_space<vmem>>, vector<8x256xf32>
    %10 = arith.subf %8, %9 : vector<8x256xf32>
    %c0_7 = arith.constant 0 : index
    %c0_8 = arith.constant 0 : index
    %11 = vector.load %arg6[%c0_7, %c0_8] : memref<8x1xf32, #tpu.memory_space<vmem>>, vector<8x1xf32>
    %12 = arith.mulf %10, %10 : vector<8x256xf32>
    %cst = arith.constant dense<0.000000e+00> : vector<8xf32>
    %13 = vector.multi_reduction <add>, %12, %cst [1] : vector<8x256xf32> to vector<8xf32>
    %14 = vector.shape_cast %13 : vector<8xf32> to vector<8x1xf32>
    %15 = arith.addf %11, %14 : vector<8x1xf32>
    %c0_9 = arith.constant 0 : index
    %c0_10 = arith.constant 0 : index
    %16 = vector.load %arg6[%c0_9, %c0_10] : memref<8x1xf32, #tpu.memory_space<vmem>>, vector<8x1xf32>
    tpu.vector_store %arg6[%c0_9, %c0_10], %15 {strides = array<i32>} : memref<8x1xf32, #tpu.memory_space<vmem>>, vector<8x1xf32>,
    %c0_i32_11 = arith.constant 0 : i32
    %17 = arith.cmpi eq, %arg2, %c0_i32_11 : i32
    %18 = arith.extui %17 : i1 to i32
    %c0_i32_12 = arith.constant 0 : i32
    %19 = arith.cmpi ne, %18, %c0_i32_12 : i32
    scf.if %19 {
      %c0_16 = arith.constant 0 : index
      %c0_17 = arith.constant 0 : index
      %25 = vector.load %arg6[%c0_16, %c0_17] : memref<8x1xf32, #tpu.memory_space<vmem>>, vector<8x1xf32>
      %cst_18 = arith.constant 3.906250e-03 : f32
      %26 = vector.broadcast %cst_18 : f32 to vector<8x1xf32>
      %27 = arith.mulf %25, %26 : vector<8x1xf32>
      %cst_19 = arith.constant 9.99999997E-7 : f32
      %28 = vector.broadcast %cst_19 : f32 to vector<8x1xf32>
      %29 = arith.addf %27, %28 : vector<8x1xf32>
      %30 = math.sqrt %29 : vector<8x1xf32>
      %c1_i32 = arith.constant 1 : i32
      %31 = arith.muli %arg0, %c1_i32 : i32
      %32 = arith.addi %31, %arg1 : i32
      %c8_i32 = arith.constant 8 : i32
      %33 = arith.muli %32, %c8_i32 : i32
      %34 = tpu.iota {dimensions = array<i32: 0>} : vector<8x1xi32>
      %35 = vector.broadcast %33 : i32 to vector<8x1xi32>
      %36 = arith.addi %35, %34 : vector<8x1xi32>
      %c8_i32_20 = arith.constant 8 : i32
      %37 = vector.broadcast %c8_i32_20 : i32 to vector<8x1xi32>
      %38 = arith.cmpi slt, %36, %37 : vector<8x1xi32>
      %cst_21 = arith.constant 0.000000e+00 : f32
      %39 = vector.broadcast %cst_21 : f32 to vector<8x1xf32>
      %40 = arith.select %38, %30, %39 : vector<8x1xi1>, vector<8x1xf32>
      %c0_22 = arith.constant 0 : index
      %c0_23 = arith.constant 0 : index
      %41 = vector.load %arg7[%c0_22, %c0_23] : memref<1x1xf32, #tpu.memory_space<vmem>>, vector<1x1xf32>
      %cst_24 = arith.constant dense<0.000000e+00> : vector<1xf32>
      %42 = vector.multi_reduction <add>, %40, %cst_24 [0] : vector<8x1xf32> to vector<1xf32>
      %43 = vector.shape_cast %42 : vector<1xf32> to vector<1x1xf32>
      %44 = arith.addf %41, %43 : vector<1x1xf32>
      %c0_25 = arith.constant 0 : index
      %c0_26 = arith.constant 0 : index
      %45 = vector.load %arg7[%c0_25, %c0_26] : memref<1x1xf32, #tpu.memory_space<vmem>>, vector<1x1xf32>
      tpu.vector_store %arg7[%c0_25, %c0_26], %44 {strides = array<i32>} : memref<1x1xf32, #tpu.memory_space<vmem>>, vector<1x1xf32>,
    } else {
    }
    %c0_i32_13 = arith.constant 0 : i32
    %20 = arith.cmpi eq, %arg1, %c0_i32_13 : i32
    %c0_i32_14 = arith.constant 0 : i32
    %21 = arith.cmpi eq, %arg2, %c0_i32_14 : i32
    %22 = arith.andi %20, %21 : i1
    %23 = arith.extui %22 : i1 to i32
    %c0_i32_15 = arith.constant 0 : i32
    %24 = arith.cmpi ne, %23, %c0_i32_15 : i32
    scf.if %24 {
      %c0_16 = arith.constant 0 : index
      %c0_17 = arith.constant 0 : index
      %25 = vector.load %arg7[%c0_16, %c0_17] : memref<1x1xf32, #tpu.memory_space<vmem>>, vector<1x1xf32>
      %c0_18 = arith.constant 0 : index
      %c0_19 = arith.constant 0 : index
      %c0_20 = arith.constant 0 : index
      %26 = vector.load %arg5[%c0_18, %c0_19, %c0_20] : memref<1x1x1xf32, #tpu.memory_space<vmem>>, vector<1x1x1xf32>
      %27 = vector.shape_cast %26 : vector<1x1x1xf32> to vector<1x1xf32>
      %28 = vector.shape_cast %25 : vector<1x1xf32> to vector<1x1x1xf32>
      tpu.vector_store %arg5[%c0_18, %c0_19, %c0_20], %28 {strides = array<i32>} : memref<1x1x1xf32, #tpu.memory_space<vmem>>, vector<1x1x1xf32>,
    } else {
    }
    return
  }
  func.func @transform_0(%arg0: i32, %arg1: i32, %arg2: i32) -> (i32, i32) {
    %c1_i32 = arith.constant 1 : i32
    %0 = arith.muli %arg0, %c1_i32 : i32
    %1 = arith.addi %0, %arg1 : i32
    %c0_i32 = arith.constant 0 : i32
    %2 = arith.minsi %1, %c0_i32 : i32
    %c0_i32_0 = arith.constant 0 : i32
    return %2, %arg2 : i32, i32
  }
  func.func @transform_1(%arg0: i32, %arg1: i32, %arg2: i32) -> (i32, i32) {
    %c1_i32 = arith.constant 1 : i32
    %0 = arith.muli %arg0, %c1_i32 : i32
    %1 = arith.addi %0, %arg1 : i32
    %c0_i32 = arith.constant 0 : i32
    %2 = arith.minsi %1, %c0_i32 : i32
    %c0_i32_0 = arith.constant 0 : i32
    return %2, %arg2 : i32, i32
  }
  func.func @transform_2(%arg0: i32, %arg1: i32, %arg2: i32) -> (i32, i32, i32) {
    %c0_i32 = arith.constant 0 : i32
    %c0_i32_0 = arith.constant 0 : i32
    %c0_i32_1 = arith.constant 0 : i32
    return %arg0, %c0_i32, %c0_i32_0 : i32, i32, i32
  }
}

</mosaic_0001>

<llo_original>
// kernel: tpu_custom_call.1
$region0: #{tpu_custom_call.1}
  #allocation0 [shape = 'u32[]', space=smem, size = 0x4, offset = 0x4, fixed_abs, tag = 'smem constant byte address 0x4 - core index']
  #allocation1 [shape = 'u32[144,128]{1,0:T(1,128)}', space=vmem, size = 0x12000, scoped, tag = 'internal scratch']
  #allocation2 [shape = 'f32[8,1]{1,0:T(8,128)}', space=vmem, size = 0x1000, scoped, tag = 'scratch operand']
  #allocation3 [shape = 'f32[1,1]{1,0:T(1,128)}', space=vmem, size = 0x200, scoped, tag = 'scratch operand']
  %s0 = inlined_call_operand.hbm [shape: f32[8,256], index: 0, kind: input, shape index: {}]
  %s1 = inlined_call_operand.hbm [shape: f32[8,256], index: 1, kind: input, shape index: {}]
  %s2 = inlined_call_operand.hbm [shape: f32[1,1,1], index: 2, kind: output, shape index: {}]
  %s3 = sld [smem:[#allocation0]]
  $region42: #{tpu_custom_call.1} parent=0
    _
  %s5 = ssub.s32 1, %s3
  %s6 = scalar_select 0, %s5, %s3
  $region1: #{tpu_custom_call.1} parent=0
    #allocation4 [shape = 'u8[8192]{0}', space=vmem, size = 0x2000, scoped, tag = 'input window, operand 0, single buffered']
    #allocation5 [shape = 's32[1]{0}', space=sflag, size = 0x4, scoped, tag = 'scoped memory for tpu_custom_call.1']
    #allocation6 [shape = 's32[1]{0}', space=sflag, size = 0x4, scoped, tag = 'scoped memory for tpu_custom_call.1']
    #allocation7 [shape = 'u8[8192]{0}', space=vmem, size = 0x2000, scoped, tag = 'input window, operand 1, single buffered']
    #allocation8 [shape = 's32[1]{0}', space=sflag, size = 0x4, scoped, tag = 'scoped memory for tpu_custom_call.1']
    #allocation9 [shape = 'u8[512]{0}', space=vmem, size = 0x400, scoped, tag = 'output window, operand 0, single buffered']
    %7 = vsyncpa [#allocation5], 0
    %8 = vsyncpa [#allocation8], 0
    %9 = vsyncpa [#allocation6], 0
    // Predicated region
    $region2: #{tpu_custom_call.1} parent=1 // pred_check
      _
    $region3: #{tpu_custom_call.1} parent=1 // pred_check_branch
      %11 = sbr.rel (0) target = $region5
    $region4: #{tpu_custom_call.1} parent=1 // pred_region
      %s12 = sadd.s32 0, 0
      %p13 = scmp.lt.s32.totalorder %s12, 0
      %s14 = scalar_select %p13, %s12, 0
      %s16 = ssub.s32 256, 256
      %17 = vsyncadd [#allocation5], %s16
      %s18 = smul.addr %s14, 2
      %s19 = smul.addr %s18, 128
      %s20 = scalar_lea.hbm %s0, %s19
      %s22 = sshll.u32 [#allocation4], 4
      %s23 = int_to_ptr.vmem [resolvable:$true] %s22
      %25 = dma.hbm_to_vmem [thread:$0]  %s20, 256, %s23, [#allocation5]
    $region5: #{tpu_custom_call.1} parent=1 // pred_fallthru
      _
    // Predicated region
    $region6: #{tpu_custom_call.1} parent=1 // pred_check
      _
    $region7: #{tpu_custom_call.1} parent=1 // pred_check_branch
      %27 = sbr.rel (0) target = $region9
    $region8: #{tpu_custom_call.1} parent=1 // pred_region
      %s28 = sadd.s32 0, 0
      %p29 = scmp.lt.s32.totalorder %s28, 0
      %s30 = scalar_select %p29, %s28, 0
      %s32 = ssub.s32 256, 256
      %33 = vsyncadd [#allocation8], %s32
      %s34 = smul.addr %s30, 2
      %s35 = smul.addr %s34, 128
      %s36 = scalar_lea.hbm %s1, %s35
      %s38 = sshll.u32 [#allocation7], 4
      %s39 = int_to_ptr.vmem [resolvable:$true] %s38
      %41 = dma.hbm_to_vmem [thread:$0]  %s36, 256, %s39, [#allocation8]
    $region9: #{tpu_custom_call.1} parent=1 // pred_fallthru
      _
    // Predicated region
    $region10: #{tpu_custom_call.1} parent=1 // pred_check
      _
    $region11: #{tpu_custom_call.1} parent=1 // pred_check_branch
      %43 = sbr.rel (0) target = $region13
    $region12: #{tpu_custom_call.1} parent=1 // pred_region
      %44 = dma.done [#allocation5], 256
    $region13: #{tpu_custom_call.1} parent=1 // pred_fallthru
      _
    // Predicated region
    $region14: #{tpu_custom_call.1} parent=1 // pred_check
      _
    $region15: #{tpu_custom_call.1} parent=1 // pred_check_branch
      %46 = sbr.rel (0) target = $region17
    $region16: #{tpu_custom_call.1} parent=1 // pred_region
      %47 = dma.done [#allocation8], 256
    $region17: #{tpu_custom_call.1} parent=1 // pred_fallthru
      _
    %s48 = sadd.s32 0, 0
    %p49 = scmp.lt.s32.totalorder %s48, 0
    %s50 = scalar_select %p49, %s48, 0
    %s51 = sadd.s32 0, 0
    %p52 = scmp.lt.s32.totalorder %s51, 0
    %s53 = scalar_select %p52, %s51, 0
    %p54 = scmp.eq.s32.totalorder 0, 0
    %p55 = scmp.eq.s32.totalorder 0, 0
    %p56 = pnand %p54, %p55
    %p57 = pneg %p56
    // Predicated region
    $region18: #{tpu_custom_call.1} parent=1 // pred_check
      _
    $region19: #{tpu_custom_call.1} parent=1 // pred_check_branch
      %59 = sbr.rel (%p56) target = $region21
    $region20: #{tpu_custom_call.1} parent=1 // pred_region
      %vm60 = vcmask 0
      %61 = vst.msk [vmem:[#allocation3] sm:$0x1] %vm60, 0.0
    $region21: #{tpu_custom_call.1} parent=1 // pred_fallthru
      _
    // Predicated region
    $region22: #{tpu_custom_call.1} parent=1 // pred_check
      %p62 = pneg %p55
    $region23: #{tpu_custom_call.1} parent=1 // pred_check_branch
      %64 = sbr.rel (%p62) target = $region25
    $region24: #{tpu_custom_call.1} parent=1 // pred_region
      %vm65 = vcmask 7168
      %66 = vst.msk [vmem:[#allocation2] sm:$0xff] %vm65, 0.0
    $region25: #{tpu_custom_call.1} parent=1 // pred_fallthru
      _
    %v67 = vld [vmem:[#allocation4] sm:$0xff]
    %v68 = vld [vmem:[#allocation4 + $0x8] sm:$0xff]
    %v69 = vld [vmem:[#allocation7] sm:$0xff]
    %v70 = vld [vmem:[#allocation7 + $0x8] sm:$0xff]
    %v71 = vsub.f32 %v67, %v69
    %v72 = vsub.f32 %v68, %v70
    %v73 = vld [vmem:[#allocation2] sm:$0xff]
    %v74 = vmul.f32 %v71, %v71
    %v75 = vmul.f32 %v72, %v72
    %v76 = vadd.f32 %v74, %v75
    %77 = vadd.xlane.f32.xlu0 %v76
    %v78 = vpop.xlane.xlu0 %77
    %v79 = vadd.f32 %v73, %v78
    %vm80 = vcmask 7168
    %81 = vst.msk [vmem:[#allocation2] sm:$0xff] %vm80, %v79
    // Predicated region
    $region26: #{tpu_custom_call.1} parent=1 // pred_check
      %p82 = pneg %p55
    $region27: #{tpu_custom_call.1} parent=1 // pred_check_branch
      %84 = sbr.rel (%p82) target = $region29
    $region28: #{tpu_custom_call.1} parent=1 // pred_region
      %v85 = vld [vmem:[#allocation2] sm:$0xff]
      %v86 = vmul.f32 %v85, 0.00390625
      %v87 = vadd.f32 %v86, 1e-06
      %v88 = vrsqrt.pop %v87
      %v89 = vmul.f32 %v87, %v88
      %vm90 = vcmp.eq.f32.partialorder %v87, inf
      %v91 = vsel %vm90, %v87, %v89
      %vm92 = vcmp.eq.f32.partialorder %v87, 0.0
      %v93 = vand.u32 %v87, 2147483648
      %v94 = vsel %vm92, %v93, %v91
      %s95 = sadd.s32 0, 0
      %s96 = smul.u32 %s95, 8
      %v97 = vlaneseq
      %v98 = vshrl.u32 %v97, 7
      %v99 = vstv %s96
      %v100 = vadd.s32 %v99, %v98
      %vm101 = vcmp.lt.s32.totalorder %v100, 8
      %v102 = vsel %vm101, %v94, 0.0
      %v103 = vld [vmem:[#allocation3] sm:$0x1]
      %v104 = vsel %vm80, %v102, 0.0
      %v105 = vrot.slane %v104, 4
      %v106 = vadd.f32 %v104, %v105
      %v107 = vrot.slane %v106, 2
      %v108 = vadd.f32 %v106, %v107
      %v109 = vrot.slane %v108, 1
      %v110 = vadd.f32 %v108, %v109
      %v111 = vadd.f32 %v103, %v110
      %vm112 = vcmask 0
      %113 = vst.msk [vmem:[#allocation3] sm:$0x1] %vm112, %v111
    $region29: #{tpu_custom_call.1} parent=1 // pred_fallthru
      _
    // Predicated region
    $region30: #{tpu_custom_call.1} parent=1 // pred_check
      _
    $region31: #{tpu_custom_call.1} parent=1 // pred_check_branch
      %115 = sbr.rel (%p56) target = $region33
    $region32: #{tpu_custom_call.1} parent=1 // pred_region
      %v116 = vld [vmem:[#allocation3] sm:$0x1]
      %vm117 = vcmask 0
      %118 = vst.msk [vmem:[#allocation9] sm:$0x1] %vm117, %v116
    $region33: #{tpu_custom_call.1} parent=1 // pred_fallthru
      _
    // Predicated region
    $region34: #{tpu_custom_call.1} parent=1 // pred_check
      _
    $region35: #{tpu_custom_call.1} parent=1 // pred_check_branch
      %120 = sbr.rel (0) target = $region37
    $region36: #{tpu_custom_call.1} parent=1 // pred_region
      %s122 = ssub.s32 16, 16
      %123 = vsyncadd [#allocation6], %s122
      %s125 = sshll.u32 [#allocation9], 4
      %s126 = int_to_ptr.vmem [resolvable:$true] %s125
      %128 = dma.vmem_to_hbm [thread:$0]  %s126, 16, %s2, [#allocation6]
    $region37: #{tpu_custom_call.1} parent=1 // pred_fallthru
      _
    // Predicated region
    $region38: #{tpu_custom_call.1} parent=1 // pred_check
      _
    $region39: #{tpu_custom_call.1} parent=1 // pred_check_branch
      %130 = sbr.rel (0) target = $region41
    $region40: #{tpu_custom_call.1} parent=1 // pred_region
      %131 = dma.done [#allocation6], 16
    $region41: #{tpu_custom_call.1} parent=1 // pred_fallthru
      _
    %132 = vsyncpa [#allocation5], 1
    %133 = vsyncpa [#allocation8], 1
    %134 = vsyncpa [#allocation6], 1

</llo_original>
